<compile_context>
chip_gen: v5e
topology: v5e:2x2
jax: 0.10.0
libtpu: 0.0.40
codegen_flags: <defaults>
</compile_context>

<pallas_src>
import math
from functools import partial

import jax
import jax.numpy as jnp
from jax.experimental import pallas as pl
from jax.experimental.pallas import tpu as pltpu

_BLOCK_BYTES = 8 << 20          # target bytes per block buffer
_VMEM_LIMIT_BYTES = 48 << 20    # 2 bufs in + 2 bufs out at 8 MiB = 32 MiB + slack

# dimension_semantics candidates: CORE_PARALLEL splits the lane-block axis
# across TensorCores on multi-core chips (v7x); fall back if unsupported.
_CORE_PARALLEL = getattr(pltpu, "CORE_PARALLEL", None)
_ARBITRARY = getattr(pltpu, "ARBITRARY", "arbitrary")
_SEM_CHOICES = tuple(
    ([( _CORE_PARALLEL, _ARBITRARY )] if _CORE_PARALLEL is not None else [])
    + [("parallel", "arbitrary"), ("arbitrary", "arbitrary")]
)
_SEM_IDX = None                 # cached index of the first working choice


def _hilbert_kernel(x_ref, m_ref, o_ref):
    # |x| * per-channel mask; the (rc, 1) mask column broadcasts along lanes.
    o_ref[...] = jnp.abs(x_ref[...]) * m_ref[...]


def _channel_mask(C, dtype):
    """Per-channel multiplier reproducing the torch in-place slicing on the last axis."""
    idx = jnp.arange(C)
    half = C // 2 if C % 2 == 0 else (C + 1) // 2
    m = jnp.where((idx >= 1) & (idx < half), 2.0, 1.0)
    if C % 2 == 0:
        m = jnp.where(idx > half, 0.0, m)     # idx == C//2 stays at 1
    else:
        m = jnp.where(idx >= half, 0.0, m)
    return m.astype(dtype)


@partial(jax.jit, static_argnums=(1,))
def _hilbert_impl(x, sem_idx):
    if x.ndim < 3:
        raise ValueError("HilbertTransform expects (B, in_dim, in_channels)")
    if not jnp.issubdtype(x.dtype, jnp.floating) or x.dtype == jnp.dtype("float64"):
        x = x.astype(jnp.float32)

    orig_shape = x.shape
    C = orig_shape[-1]
    L0 = math.prod(orig_shape[:-1])
    dt = x.dtype
    itemsize = jnp.dtype(dt).itemsize
    sub = max(8, 32 // itemsize)              # sublane multiple for this dtype

    # Channel-major, lane-dense slab: (C, L), L a multiple of 128.
    L = pl.cdiv(L0, 128) * 128
    xt = jnp.moveaxis(x, -1, 0).reshape(C, L0)
    if L != L0:
        xt = jnp.pad(xt, ((0, 0), (0, L - L0)))
    mask = _channel_mask(C, dt).reshape(C, 1)

    # Block sizing: ~_BLOCK_BYTES per buffer; lane block multiple of 128 (or full).
    budget_lanes = (_BLOCK_BYTES // (C * itemsize)) // 128 * 128
    if budget_lanes >= 512:                   # common case: keep all channels per block
        rc, Lb = C, min(L, budget_lanes)
    else:                                     # huge channel counts: block channels too
        Lb = min(L, 512)
        rc = min(C, max(sub, (_BLOCK_BYTES // (Lb * itemsize)) // sub * sub))
    nj = pl.cdiv(L, Lb)                       # lane-block axis (leading, core-parallel)
    ni = pl.cdiv(C, rc)                       # channel-block axis

    cost = pl.CostEstimate(
        flops=2 * C * L,                      # abs + mul
        transcendentals=0,
        bytes_accessed=(2 * C * L + C) * itemsize,
    )

    out_t = pl.pallas_call(
        _hilbert_kernel,
        out_shape=jax.ShapeDtypeStruct((C, L), dt),
        grid=(nj, ni),
        in_specs=[
            pl.BlockSpec((rc, Lb), lambda j, i: (i, j)),   # signal slab
            pl.BlockSpec((rc, 1), lambda j, i: (i, 0)),    # tiny per-channel mask
        ],
        out_specs=pl.BlockSpec((rc, Lb), lambda j, i: (i, j)),
        input_output_aliases={0: 0},          # output reuses the input slab's HBM
        compiler_params=pltpu.CompilerParams(
            dimension_semantics=_SEM_CHOICES[sem_idx],
            vmem_limit_bytes=_VMEM_LIMIT_BYTES,
        ),
        cost_estimate=cost,
    )(xt, mask)

    out = out_t[:, :L0] if L != L0 else out_t
    return jnp.moveaxis(out.reshape((C,) + orig_shape[:-1]), 0, -1)


def hilbert_transform(x):
    """x: (B, in_dim, in_channels) -> same shape; matches torch HilbertTransform.forward."""
    global _SEM_IDX
    if _SEM_IDX is not None:
        return _hilbert_impl(x, _SEM_IDX)

    # First call: probe dimension-semantics support (CORE_PARALLEL is only
    # meaningful / guaranteed-available on multi-TensorCore chips and newer JAX).
    last_err = None
    for idx in range(len(_SEM_CHOICES)):
        try:
            out = jax.block_until_ready(_hilbert_impl(x, idx))
            want = jnp.abs(x.astype(jnp.float32)) * _channel_mask(x.shape[-1], jnp.float32)
            if bool(jnp.allclose(out.astype(jnp.float32), want, atol=5e-2, rtol=5e-2)):
                _SEM_IDX = idx
                return out
            last_err = RuntimeError(
                f"dimension_semantics choice {idx} produced incorrect results")
        except Exception as e:  # fall back to the next semantics choice
            last_err = e
    raise last_err


def _reference(x):
    """Pure-JAX mirror of the torch forward (actual FFT path), for checking."""
    x = x.astype(jnp.float32)
    C = x.shape[-1]
    xf = jnp.fft.fft(x, axis=1)
    xf = xf * _channel_mask(C, jnp.float32)   # broadcast over the last axis
    return jnp.abs(jnp.fft.ifft(xf, axis=1))


if __name__ == "__main__":
    key = jax.random.PRNGKey(0)

    # Shapes consistent with SignalProcessingBase.test_forward: (2, in_dim, in_channels).
    # Cover even/odd channel counts, lane padding, a multi-block + ragged-last-block
    # grid, and the reduced-precision (bf16) path.
    cases = [
        ((2, 16, 8), jnp.float32),       # even channel count
        ((2, 16, 7), jnp.float32),       # odd channel count
        ((2, 2080, 7), jnp.float32),     # B*D not a multiple of 128 -> lane padding
        ((4, 16384, 33), jnp.float32),   # multi-block grid + ragged last lane block
        ((2, 64, 8), jnp.bfloat16),      # bf16 path (half the HBM traffic)
    ]

    for shape, dt in cases:
        key, sk = jax.random.split(key)
        x = jax.random.normal(sk, shape, dtype=jnp.float32).astype(dt)

        out = jax.block_until_ready(hilbert_transform(x))
        assert out.shape == shape, (out.shape, shape)
        assert out.dtype == dt, (out.dtype, dt)

        ref = _reference(x.astype(jnp.float32))
        tol = 2e-3 if dt == jnp.float32 else 5e-2
        ok = jnp.allclose(out.astype(jnp.float32), ref, atol=tol, rtol=tol)
        assert bool(ok), (shape, str(dt),
                          float(jnp.max(jnp.abs(out.astype(jnp.float32) - ref))))

    print("KERNEL_OK")
</pallas_src>

<mosaic_0001>
module attributes {stable_mosaic.version = 11 : i64} {
  func.func @_hilbert_kernel(%arg0: i32, %arg1: i32, %arg2: memref<8x128xf32, #tpu.memory_space<vmem>>, %arg3: memref<8x1xf32, #tpu.memory_space<vmem>>, %arg4: memref<8x128xf32, #tpu.memory_space<vmem>>) attributes {dimension_semantics = [#tpu.dimension_semantics<core_parallel>, #tpu.dimension_semantics<arbitrary>], iteration_bounds = array<i64: 1, 1>, scalar_prefetch = 0 : i64, scratch_operands = 0 : i64, tpu.core_type = #tpu.core_type<tc>, window_params = [{transform_indices = @transform_0, window_bounds = array<i64: 8, 128>}, {transform_indices = @transform_1, window_bounds = array<i64: 8, 1>}, {transform_indices = @transform_2, window_bounds = array<i64: 8, 128>}]} {
    %c0 = arith.constant 0 : index
    %c0_0 = arith.constant 0 : index
    %0 = vector.load %arg2[%c0, %c0_0] : memref<8x128xf32, #tpu.memory_space<vmem>>, vector<8x128xf32>
    %1 = math.absf %0 : vector<8x128xf32>
    %c0_1 = arith.constant 0 : index
    %c0_2 = arith.constant 0 : index
    %2 = vector.load %arg3[%c0_1, %c0_2] : memref<8x1xf32, #tpu.memory_space<vmem>>, vector<8x1xf32>
    %3 = vector.broadcast %2 : vector<8x1xf32> to vector<8x128xf32>
    %4 = arith.mulf %1, %3 : vector<8x128xf32>
    %c0_3 = arith.constant 0 : index
    %c0_4 = arith.constant 0 : index
    %5 = vector.load %arg4[%c0_3, %c0_4] : memref<8x128xf32, #tpu.memory_space<vmem>>, vector<8x128xf32>
    tpu.vector_store %arg4[%c0_3, %c0_4], %4 {strides = array<i32>} : memref<8x128xf32, #tpu.memory_space<vmem>>, vector<8x128xf32>,
    return
  }
  func.func @transform_0(%arg0: i32, %arg1: i32) -> (i32, i32) {
    %c0_i32 = arith.constant 0 : i32
    return %arg1, %arg0 : i32, i32
  }
  func.func @transform_1(%arg0: i32, %arg1: i32) -> (i32, i32) {
    %c0_i32 = arith.constant 0 : i32
    %c0_i32_0 = arith.constant 0 : i32
    return %arg1, %c0_i32 : i32, i32
  }
  func.func @transform_2(%arg0: i32, %arg1: i32) -> (i32, i32) {
    %c0_i32 = arith.constant 0 : i32
    return %arg1, %arg0 : i32, i32
  }
}

module attributes {stable_mosaic.version = 11 : i64} {
  func.func @_hilbert_kernel(%arg0: i32, %arg1: i32, %arg2: memref<8x128xf32, #tpu.memory_space<vmem>>, %arg3: memref<8x1xf32, #tpu.memory_space<vmem>>, %arg4: memref<8x128xf32, #tpu.memory_space<vmem>>) attributes {dimension_semantics = [#tpu.dimension_semantics<parallel>, #tpu.dimension_semantics<arbitrary>], iteration_bounds = array<i64: 1, 1>, scalar_prefetch = 0 : i64, scratch_operands = 0 : i64, tpu.core_type = #tpu.core_type<tc>, window_params = [{transform_indices = @transform_0, window_bounds = array<i64: 8, 128>}, {transform_indices = @transform_1, window_bounds = array<i64: 8, 1>}, {transform_indices = @transform_2, window_bounds = array<i64: 8, 128>}]} {
    %c0 = arith.constant 0 : index
    %c0_0 = arith.constant 0 : index
    %0 = vector.load %arg2[%c0, %c0_0] : memref<8x128xf32, #tpu.memory_space<vmem>>, vector<8x128xf32>
    %1 = math.absf %0 : vector<8x128xf32>
    %c0_1 = arith.constant 0 : index
    %c0_2 = arith.constant 0 : index
    %2 = vector.load %arg3[%c0_1, %c0_2] : memref<8x1xf32, #tpu.memory_space<vmem>>, vector<8x1xf32>
    %3 = vector.broadcast %2 : vector<8x1xf32> to vector<8x128xf32>
    %4 = arith.mulf %1, %3 : vector<8x128xf32>
    %c0_3 = arith.constant 0 : index
    %c0_4 = arith.constant 0 : index
    %5 = vector.load %arg4[%c0_3, %c0_4] : memref<8x128xf32, #tpu.memory_space<vmem>>, vector<8x128xf32>
    tpu.vector_store %arg4[%c0_3, %c0_4], %4 {strides = array<i32>} : memref<8x128xf32, #tpu.memory_space<vmem>>, vector<8x128xf32>,
    return
  }
  func.func @transform_0(%arg0: i32, %arg1: i32) -> (i32, i32) {
    %c0_i32 = arith.constant 0 : i32
    return %arg1, %arg0 : i32, i32
  }
  func.func @transform_1(%arg0: i32, %arg1: i32) -> (i32, i32) {
    %c0_i32 = arith.constant 0 : i32
    %c0_i32_0 = arith.constant 0 : i32
    return %arg1, %c0_i32 : i32, i32
  }
  func.func @transform_2(%arg0: i32, %arg1: i32) -> (i32, i32) {
    %c0_i32 = arith.constant 0 : i32
    return %arg1, %arg0 : i32, i32
  }
}

module attributes {stable_mosaic.version = 11 : i64} {
  func.func @_hilbert_kernel(%arg0: i32, %arg1: i32, %arg2: memref<8x128xf32, #tpu.memory_space<vmem>>, %arg3: memref<8x1xf32, #tpu.memory_space<vmem>>, %arg4: memref<8x128xf32, #tpu.memory_space<vmem>>) attributes {dimension_semantics = [#tpu.dimension_semantics<arbitrary>, #tpu.dimension_semantics<arbitrary>], iteration_bounds = array<i64: 1, 1>, scalar_prefetch = 0 : i64, scratch_operands = 0 : i64, tpu.core_type = #tpu.core_type<tc>, window_params = [{transform_indices = @transform_0, window_bounds = array<i64: 8, 128>}, {transform_indices = @transform_1, window_bounds = array<i64: 8, 1>}, {transform_indices = @transform_2, window_bounds = array<i64: 8, 128>}]} {
    %c0 = arith.constant 0 : index
    %c0_0 = arith.constant 0 : index
    %0 = vector.load %arg2[%c0, %c0_0] : memref<8x128xf32, #tpu.memory_space<vmem>>, vector<8x128xf32>
    %1 = math.absf %0 : vector<8x128xf32>
    %c0_1 = arith.constant 0 : index
    %c0_2 = arith.constant 0 : index
    %2 = vector.load %arg3[%c0_1, %c0_2] : memref<8x1xf32, #tpu.memory_space<vmem>>, vector<8x1xf32>
    %3 = vector.broadcast %2 : vector<8x1xf32> to vector<8x128xf32>
    %4 = arith.mulf %1, %3 : vector<8x128xf32>
    %c0_3 = arith.constant 0 : index
    %c0_4 = arith.constant 0 : index
    %5 = vector.load %arg4[%c0_3, %c0_4] : memref<8x128xf32, #tpu.memory_space<vmem>>, vector<8x128xf32>
    tpu.vector_store %arg4[%c0_3, %c0_4], %4 {strides = array<i32>} : memref<8x128xf32, #tpu.memory_space<vmem>>, vector<8x128xf32>,
    return
  }
  func.func @transform_0(%arg0: i32, %arg1: i32) -> (i32, i32) {
    %c0_i32 = arith.constant 0 : i32
    return %arg1, %arg0 : i32, i32
  }
  func.func @transform_1(%arg0: i32, %arg1: i32) -> (i32, i32) {
    %c0_i32 = arith.constant 0 : i32
    %c0_i32_0 = arith.constant 0 : i32
    return %arg1, %c0_i32 : i32, i32
  }
  func.func @transform_2(%arg0: i32, %arg1: i32) -> (i32, i32) {
    %c0_i32 = arith.constant 0 : i32
    return %arg1, %arg0 : i32, i32
  }
}

</mosaic_0001>

<llo_original>
// kernel: _hilbert_impl.1
$region0: #{_hilbert_impl.1}
  #allocation0 [shape = 'u32[]', space=smem, size = 0x4, offset = 0x4, fixed_abs, tag = 'smem constant byte address 0x4 - core index']
  #allocation1 [shape = 'u32[72,128]{1,0:T(1,128)}', space=vmem, size = 0x9000, scoped, tag = 'internal scratch']
  %s0 = inlined_call_operand.vmem [shape: f32[8,128], index: 0, kind: input, shape index: {}, may-alias: {0,2}]
  %s1 = inlined_call_operand.vmem [shape: f32[8,1], index: 1, kind: input, shape index: {}]
  %s2 = inlined_call_operand.vmem [shape: f32[8,128], index: 2, kind: output, shape index: {}, may-alias: {0,2}]
  %s3 = sld [smem:[#allocation0]]
  $region18: #{_hilbert_impl.1} parent=0
    _
  %s5 = ssub.s32 1, %s3
  %s6 = scalar_select 0, %s5, %s3
  // Predicated region
  $region2: #{_hilbert_impl.1} parent=0 // pred_check
    _
  $region3: #{_hilbert_impl.1} parent=0 // pred_check_branch
    %8 = sbr.rel (0) target = $region5
  $region4: #{_hilbert_impl.1} parent=0 // pred_region
    %p9 = scmp.lt.s32.totalorder %s6, 0
    %s10 = scalar_select %p9, %s6, 0
    %s11 = smul.addr %s10, 8
    %s12 = scalar_lea.vmem %s0, %s11
  $region5: #{_hilbert_impl.1} parent=0 // pred_fallthru
    _
  // Predicated region
  $region6: #{_hilbert_impl.1} parent=0 // pred_check
    _
  $region7: #{_hilbert_impl.1} parent=0 // pred_check_branch
    %14 = sbr.rel (0) target = $region9
  $region8: #{_hilbert_impl.1} parent=0 // pred_region
    _
  $region9: #{_hilbert_impl.1} parent=0 // pred_fallthru
    _
  %p15 = scmp.lt.s32.totalorder %s6, 0
  %s16 = scalar_select %p15, %s6, 0
  %s17 = smul.addr %s16, 8
  %s18 = scalar_lea.vmem %s0, %s17
  %p19 = scmp.lt.s32.totalorder %s6, 0
  %s20 = scalar_select %p19, %s6, 0
  %s21 = smul.addr %s20, 8
  %s22 = scalar_lea.vmem %s2, %s21
  %p23 = scmp.lt.s32.totalorder %s6, 0
  %s24 = scalar_select %p23, %s6, 0
  %s25 = smul.addr %s24, 8
  %s26 = scalar_lea.vmem %s0, %s25
  %p27 = scmp.lt.s32.totalorder %s6, 0
  %s28 = scalar_select %p27, %s6, 0
  %s29 = smul.addr %s28, 8
  %s30 = scalar_lea.vmem %s2, %s29
  %v31 = vld [vmem:[%s26] sm:$0xff]
  %v32 = vand.u32 2147483647, %v31
  %v33 = vld [vmem:[%s1] sm:$0xff]
  %35 = vset.pattern.permute.xlu0 0
  %36 = vperm.xlu0 %35, %v33
  %v37 = vpop.permute.xlu0 %36
  %v39 = vmul.f32 %v32, %v37
  %40 = vst [vmem:[%s30] sm:$0xff] %v39
  %p41 = scmp.lt.s32.totalorder %s6, 0
  %s42 = scalar_select %p41, %s6, 0
  %s43 = smul.addr %s42, 8
  %s44 = scalar_lea.vmem %s2, %s43
  // Predicated region
  $region10: #{_hilbert_impl.1} parent=0 // pred_check
    _
  $region11: #{_hilbert_impl.1} parent=0 // pred_check_branch
    %46 = sbr.rel (0) target = $region13
  $region12: #{_hilbert_impl.1} parent=0 // pred_region
    _
  $region13: #{_hilbert_impl.1} parent=0 // pred_fallthru
    _
  // Predicated region
  $region14: #{_hilbert_impl.1} parent=0 // pred_check
    _
  $region15: #{_hilbert_impl.1} parent=0 // pred_check_branch
    %48 = sbr.rel (0) target = $region17
  $region16: #{_hilbert_impl.1} parent=0 // pred_region
    %p49 = scmp.lt.s32.totalorder %s6, 0
    %s50 = scalar_select %p49, %s6, 0
    %s51 = smul.addr %s50, 8
    %s52 = scalar_lea.vmem %s2, %s51
  $region17: #{_hilbert_impl.1} parent=0 // pred_fallthru
    _

// kernel: _hilbert_impl.1
$region0: #{_hilbert_impl.1}
  #allocation0 [shape = 'u32[]', space=smem, size = 0x4, offset = 0x4, fixed_abs, tag = 'smem constant byte address 0x4 - core index']
  #allocation1 [shape = 'u32[72,128]{1,0:T(1,128)}', space=vmem, size = 0x9000, scoped, tag = 'internal scratch']
  %s0 = inlined_call_operand.vmem [shape: f32[8,128], index: 0, kind: input, shape index: {}, may-alias: {0,2}]
  %s1 = inlined_call_operand.vmem [shape: f32[8,1], index: 1, kind: input, shape index: {}]
  %s2 = inlined_call_operand.vmem [shape: f32[8,128], index: 2, kind: output, shape index: {}, may-alias: {0,2}]
  %s3 = sld [smem:[#allocation0]]
  $region18: #{_hilbert_impl.1} parent=0
    _
  %s5 = ssub.s32 1, %s3
  %s6 = scalar_select 0, %s5, %s3
  // Predicated region
  $region2: #{_hilbert_impl.1} parent=0 // pred_check
    _
  $region3: #{_hilbert_impl.1} parent=0 // pred_check_branch
    %8 = sbr.rel (0) target = $region5
  $region4: #{_hilbert_impl.1} parent=0 // pred_region
    _
  $region5: #{_hilbert_impl.1} parent=0 // pred_fallthru
    _
  // Predicated region
  $region6: #{_hilbert_impl.1} parent=0 // pred_check
    _
  $region7: #{_hilbert_impl.1} parent=0 // pred_check_branch
    %10 = sbr.rel (0) target = $region9
  $region8: #{_hilbert_impl.1} parent=0 // pred_region
    _
  $region9: #{_hilbert_impl.1} parent=0 // pred_fallthru
    _
  %v11 = vld [vmem:[%s0] sm:$0xff]
  %v12 = vand.u32 2147483647, %v11
  %v13 = vld [vmem:[%s1] sm:$0xff]
  %15 = vset.pattern.permute.xlu0 0
  %16 = vperm.xlu0 %15, %v13
  %v17 = vpop.permute.xlu0 %16
  %v19 = vmul.f32 %v12, %v17
  %20 = vst [vmem:[%s2] sm:$0xff] %v19
  // Predicated region
  $region10: #{_hilbert_impl.1} parent=0 // pred_check
    _
  $region11: #{_hilbert_impl.1} parent=0 // pred_check_branch
    %22 = sbr.rel (0) target = $region13
  $region12: #{_hilbert_impl.1} parent=0 // pred_region
    _
  $region13: #{_hilbert_impl.1} parent=0 // pred_fallthru
    _
  // Predicated region
  $region14: #{_hilbert_impl.1} parent=0 // pred_check
    _
  $region15: #{_hilbert_impl.1} parent=0 // pred_check_branch
    %24 = sbr.rel (0) target = $region17
  $region16: #{_hilbert_impl.1} parent=0 // pred_region
    _
  $region17: #{_hilbert_impl.1} parent=0 // pred_fallthru
    _

// kernel: _hilbert_impl.1
$region0: #{_hilbert_impl.1}
  #allocation0 [shape = 'u32[]', space=smem, size = 0x4, offset = 0x4, fixed_abs, tag = 'smem constant byte address 0x4 - core index']
  #allocation1 [shape = 'u32[72,128]{1,0:T(1,128)}', space=vmem, size = 0x9000, scoped, tag = 'internal scratch']
  %s0 = inlined_call_operand.vmem [shape: f32[8,128], index: 0, kind: input, shape index: {}, may-alias: {0,2}]
  %s1 = inlined_call_operand.vmem [shape: f32[8,1], index: 1, kind: input, shape index: {}]
  %s2 = inlined_call_operand.vmem [shape: f32[8,128], index: 2, kind: output, shape index: {}, may-alias: {0,2}]
  %s3 = sld [smem:[#allocation0]]
  $region18: #{_hilbert_impl.1} parent=0
    _
  %s5 = ssub.s32 1, %s3
  %s6 = scalar_select 0, %s5, %s3
  // Predicated region
  $region2: #{_hilbert_impl.1} parent=0 // pred_check
    _
  $region3: #{_hilbert_impl.1} parent=0 // pred_check_branch
    %8 = sbr.rel (0) target = $region5
  $region4: #{_hilbert_impl.1} parent=0 // pred_region
    _
  $region5: #{_hilbert_impl.1} parent=0 // pred_fallthru
    _
  // Predicated region
  $region6: #{_hilbert_impl.1} parent=0 // pred_check
    _
  $region7: #{_hilbert_impl.1} parent=0 // pred_check_branch
    %10 = sbr.rel (0) target = $region9
  $region8: #{_hilbert_impl.1} parent=0 // pred_region
    _
  $region9: #{_hilbert_impl.1} parent=0 // pred_fallthru
    _
  %v11 = vld [vmem:[%s0] sm:$0xff]
  %v12 = vand.u32 2147483647, %v11
  %v13 = vld [vmem:[%s1] sm:$0xff]
  %15 = vset.pattern.permute.xlu0 0
  %16 = vperm.xlu0 %15, %v13
  %v17 = vpop.permute.xlu0 %16
  %v19 = vmul.f32 %v12, %v17
  %20 = vst [vmem:[%s2] sm:$0xff] %v19
  // Predicated region
  $region10: #{_hilbert_impl.1} parent=0 // pred_check
    _
  $region11: #{_hilbert_impl.1} parent=0 // pred_check_branch
    %22 = sbr.rel (0) target = $region13
  $region12: #{_hilbert_impl.1} parent=0 // pred_region
    _
  $region13: #{_hilbert_impl.1} parent=0 // pred_fallthru
    _
  // Predicated region
  $region14: #{_hilbert_impl.1} parent=0 // pred_check
    _
  $region15: #{_hilbert_impl.1} parent=0 // pred_check_branch
    %24 = sbr.rel (0) target = $region17
  $region16: #{_hilbert_impl.1} parent=0 // pred_region
    _
  $region17: #{_hilbert_impl.1} parent=0 // pred_fallthru
    _

</llo_original>
